<compile_context>
chip_gen: v7x
topology: tpu7x:2x2x1
jax: 0.10.0
libtpu: 0.0.40
codegen_flags: <defaults>
</compile_context>

<pallas_src>
import functools

import jax
import jax.numpy as jnp
from jax import lax
from jax.experimental import pallas as pl
from jax.experimental.pallas import tpu as pltpu

IN_FEATURES = 768
HIDDEN = 100
HIDDEN_PAD = 128          # zero-padded hidden width (mathematically exact)
W2_ROWS_PAD = 8           # zero-padded rows for the layer-2 MXU operand
OUT_FEATURES = 1

# 2 x 1024 x 768 x 4B = 6 MiB double-buffered x + ~0.8 MiB resident weights:
# fits the default scoped-VMEM budget on v5e/v6e/v7x.
DEFAULT_TILE_B = 1024


def _round_up(n, m):
    return ((n + m - 1) // m) * m


def _disaster_kernel(x_ref, w1_ref, b1_ref, w2_ref, b2_ref, o_ref, *, cast_bf16):
    x = x_ref[...]
    w1 = w1_ref[...]
    if cast_bf16 or x.dtype == jnp.bfloat16:   # trace-time switch (v5e MXU rate)
        x = x.astype(jnp.bfloat16)
        w1 = w1.astype(jnp.bfloat16)

    # Layer 1: Linear(768 -> 128pad) on the MXU, f32 accumulate, + bias + ReLU.
    h = jnp.dot(x, w1, preferred_element_type=jnp.float32)       # (tile_b, 128)
    h = jnp.maximum(h + b1_ref[...], 0.0)

    # Layer 2: 128 -> 1 projection on the MXU, lane-dense orientation
    # (contract both minor dims, i.e. the q @ k.T attention pattern):
    #   (8, 128) x (tile_b, 128) -> (8, tile_b); only row 0 is real.
    y8 = lax.dot_general(w2_ref[...], h, (((1,), (1,)), ((), ())),
                         preferred_element_type=jnp.float32)     # (8, tile_b)
    y = jax.nn.sigmoid(y8[0:1, :] + b2_ref[0, 0])                # (1, tile_b), EUP
    o_ref[...] = y.astype(o_ref.dtype)                            # lane-dense store


def disaster_classifier(x, w1p, b1p, w2p, b2p, *, tile_b=DEFAULT_TILE_B,
                        cast_mxu_inputs_to_bf16=False, vmem_limit_bytes=None):
    """Fused forward pass.

    x   : (B, 768)   float32 (or bfloat16)
    w1p : (768, 128) float32  (transposed + hidden zero-padded from (100, 768))
    b1p : (1, 128)   float32  (zero-padded from (100,))
    w2p : (8, 128)   float32  (row-0/hidden zero-padded from (1, 100))
    b2p : (1, 1)     float32  (SMEM scalar)
    returns (B, 1) float32
    """
    B = x.shape[0]
    # Clamp the batch tile for small inputs; keep it sublane-aligned, and
    # lane-aligned (multiple of 128) whenever the grid has more than one tile
    # so the lane-dense output blocks stay aligned.
    tile_b = max(8, min(tile_b, _round_up(B, 8)))
    tile_b = _round_up(tile_b, 8)
    if tile_b < B:
        tile_b = _round_up(tile_b, 128)
    num_tiles = pl.cdiv(B, tile_b)
    padded_b = num_tiles * tile_b
    # NOTE: no jnp.pad of x -- the final partial block reads out-of-bounds rows
    # whose (garbage) outputs are sliced off below; rows are independent.

    kernel = functools.partial(_disaster_kernel, cast_bf16=cast_mxu_inputs_to_bf16)

    compiler_kwargs = dict(dimension_semantics=("parallel",))
    # TODO(synk): on v7x, verify both TensorCores get batch tiles; if one core
    # is idle switch this axis to pltpu.CORE_PARALLEL.
    if vmem_limit_bytes is not None:
        compiler_kwargs["vmem_limit_bytes"] = vmem_limit_bytes

    out = pl.pallas_call(
        kernel,
        out_shape=jax.ShapeDtypeStruct((1, padded_b), jnp.float32),
        grid_spec=pltpu.PrefetchScalarGridSpec(
            num_scalar_prefetch=0,
            grid=(num_tiles,),
            in_specs=[
                # x: batch-tiled; BlockSpec double-buffering overlaps DMA/compute.
                pl.BlockSpec((tile_b, IN_FEATURES), lambda i: (i, 0)),
                # Weights/biases: constant index map -> VMEM-resident across grid.
                pl.BlockSpec((IN_FEATURES, HIDDEN_PAD), lambda i: (0, 0)),
                pl.BlockSpec((1, HIDDEN_PAD), lambda i: (0, 0)),
                pl.BlockSpec((W2_ROWS_PAD, HIDDEN_PAD), lambda i: (0, 0)),
                # b2: scalar in SMEM (no VMEM DMA block).
                pl.BlockSpec(memory_space=pltpu.MemorySpace.SMEM),
            ],
            # Lane-dense output: one (1, tile_b) row slab per grid step.
            out_specs=pl.BlockSpec((1, tile_b), lambda i: (0, i)),
        ),
        compiler_params=pltpu.CompilerParams(**compiler_kwargs),
        cost_estimate=pl.CostEstimate(
            flops=2 * padded_b * HIDDEN_PAD * (IN_FEATURES + 1),
            transcendentals=padded_b,
            bytes_accessed=padded_b * IN_FEATURES * x.dtype.itemsize
            + padded_b * 4
            + (IN_FEATURES * HIDDEN_PAD + HIDDEN_PAD
               + W2_ROWS_PAD * HIDDEN_PAD + 1) * 4,
        ),
    )(x, w1p, b1p, w2p, b2p)

    return out[0, :B][:, None]


def init_params(key):
    """Synthetic parameters in the PyTorch nn.Linear layout / init."""
    k1, k2, k3, k4 = jax.random.split(key, 4)
    bound1 = 1.0 / jnp.sqrt(jnp.float32(IN_FEATURES))
    bound2 = 1.0 / jnp.sqrt(jnp.float32(HIDDEN))
    w1 = jax.random.uniform(k1, (HIDDEN, IN_FEATURES), jnp.float32, -bound1, bound1)
    b1 = jax.random.uniform(k2, (HIDDEN,), jnp.float32, -bound1, bound1)
    w2 = jax.random.uniform(k3, (OUT_FEATURES, HIDDEN), jnp.float32, -bound2, bound2)
    b2 = jax.random.uniform(k4, (OUT_FEATURES,), jnp.float32, -bound2, bound2)
    return w1, b1, w2, b2


def prepare_params(w1, b1, w2, b2):
    """One-time PyTorch layout -> kernel layout (transpose + exact zero-pad)."""
    w1p = jnp.zeros((IN_FEATURES, HIDDEN_PAD), jnp.float32).at[:, :HIDDEN].set(w1.T)
    b1p = jnp.zeros((1, HIDDEN_PAD), jnp.float32).at[:, :HIDDEN].set(b1[None, :])
    w2p = jnp.zeros((W2_ROWS_PAD, HIDDEN_PAD), jnp.float32).at[:OUT_FEATURES, :HIDDEN].set(w2)
    b2p = b2.reshape(1, 1).astype(jnp.float32)
    return w1p, b1p, w2p, b2p


def reference_forward(x, w1, b1, w2, b2):
    h = jnp.maximum(x @ w1.T + b1, 0.0)
    return jax.nn.sigmoid(h @ w2.T + b2)


if __name__ == "__main__":
    key = jax.random.PRNGKey(0)
    kx1, kx2, kp = jax.random.split(key, 3)

    w1, b1, w2, b2 = init_params(kp)
    w1p, b1p, w2p, b2p = prepare_params(w1, b1, w2, b2)

    # 1) Small batch: single (padded) tile.
    B1 = 8
    x1 = jax.random.normal(kx1, (B1, IN_FEATURES), jnp.float32)
    out1 = jax.block_until_ready(disaster_classifier(x1, w1p, b1p, w2p, b2p))
    ref1 = reference_forward(x1, w1, b1, w2, b2)
    assert out1.shape == (B1, OUT_FEATURES)
    assert jnp.allclose(out1, ref1, atol=1e-5, rtol=1e-5), "mismatch vs. reference (B=8)"

    # 2) Ragged batch: multi-tile grid with a partial final block (no x padding).
    B2 = 300
    x2 = jax.random.normal(kx2, (B2, IN_FEATURES), jnp.float32)
    out2 = jax.block_until_ready(
        disaster_classifier(x2, w1p, b1p, w2p, b2p, tile_b=128))
    ref2 = reference_forward(x2, w1, b1, w2, b2)
    assert out2.shape == (B2, OUT_FEATURES)
    assert jnp.allclose(out2, ref2, atol=1e-5, rtol=1e-5), "mismatch vs. reference (B=300)"

    print("KERNEL_OK")
</pallas_src>

<mosaic_0001>
module attributes {stable_mosaic.version = 11 : i64} {
  func.func @_disaster_kernel(%arg0: i32, %arg1: memref<8x768xf32, #tpu.memory_space<vmem>>, %arg2: memref<768x128xf32, #tpu.memory_space<vmem>>, %arg3: memref<1x128xf32, #tpu.memory_space<vmem>>, %arg4: memref<8x128xf32, #tpu.memory_space<vmem>>, %arg5: memref<1x1xf32, #tpu.memory_space<smem>>, %arg6: memref<1x8xf32, #tpu.memory_space<vmem>>) attributes {dimension_semantics = [#tpu.dimension_semantics<parallel>], iteration_bounds = array<i64: 1>, scalar_prefetch = 0 : i64, scratch_operands = 0 : i64, tpu.core_type = #tpu.core_type<tc>, window_params = [{transform_indices = @transform_0, window_bounds = array<i64: 8, 768>}, {pipeline_mode = #tpu.pipeline_mode<synchronous>, transform_indices = @transform_1, window_bounds = array<i64: 768, 128>}, {pipeline_mode = #tpu.pipeline_mode<synchronous>, transform_indices = @transform_2, window_bounds = array<i64: 1, 128>}, {pipeline_mode = #tpu.pipeline_mode<synchronous>, transform_indices = @transform_3, window_bounds = array<i64: 8, 128>}, {transform_indices = @transform_4, window_bounds = array<i64: 1, 1>}, {transform_indices = @transform_5, window_bounds = array<i64: 1, 8>}]} {
    %c0 = arith.constant 0 : index
    %c0_0 = arith.constant 0 : index
    %0 = vector.load %arg1[%c0, %c0_0] : memref<8x768xf32, #tpu.memory_space<vmem>>, vector<8x768xf32>
    %c0_1 = arith.constant 0 : index
    %c0_2 = arith.constant 0 : index
    %1 = vector.load %arg2[%c0_1, %c0_2] : memref<768x128xf32, #tpu.memory_space<vmem>>, vector<768x128xf32>
    %cst = arith.constant dense<0.000000e+00> : vector<8x128xf32>
    %2 = tpu.matmul %0, %1, %cst {dimension_numbers = #tpu.dot_dimension_numbers<[1], [0], [0], [1], [0, 0, 1, 1], [], []>} : vector<8x768xf32>, vector<768x128xf32>, vector<8x128xf32> -> vector<8x128xf32>
    %c0_3 = arith.constant 0 : index
    %c0_4 = arith.constant 0 : index
    %3 = vector.load %arg3[%c0_3, %c0_4] : memref<1x128xf32, #tpu.memory_space<vmem>>, vector<1x128xf32>
    %4 = vector.broadcast %3 : vector<1x128xf32> to vector<8x128xf32>
    %5 = arith.addf %2, %4 : vector<8x128xf32>
    %cst_5 = arith.constant 0.000000e+00 : f32
    %6 = vector.broadcast %cst_5 : f32 to vector<8x128xf32>
    %7 = arith.maximumf %5, %6 : vector<8x128xf32>
    %c0_6 = arith.constant 0 : index
    %c0_7 = arith.constant 0 : index
    %8 = vector.load %arg4[%c0_6, %c0_7] : memref<8x128xf32, #tpu.memory_space<vmem>>, vector<8x128xf32>
    %cst_8 = arith.constant dense<0.000000e+00> : vector<8x8xf32>
    %9 = tpu.matmul %8, %7, %cst_8 {dimension_numbers = #tpu.dot_dimension_numbers<[1], [1], [0], [0], [0, 0, 1, 0], [], []>} : vector<8x128xf32>, vector<8x128xf32>, vector<8x8xf32> -> vector<8x8xf32>
    %10 = vector.extract_strided_slice %9 {offsets = [0, 0], sizes = [1, 8], strides = [1, 1]} : vector<8x8xf32> to vector<1x8xf32>
    %c0_9 = arith.constant 0 : index
    %c0_10 = arith.constant 0 : index
    %11 = memref.load %arg5[%c0_9, %c0_10] : memref<1x1xf32, #tpu.memory_space<smem>>
    %12 = vector.broadcast %11 : f32 to vector<1x8xf32>
    %13 = arith.addf %10, %12 : vector<1x8xf32>
    %14 = arith.negf %13 : vector<1x8xf32>
    %15 = math.exp %14 : vector<1x8xf32>
    %cst_11 = arith.constant 1.000000e+00 : f32
    %16 = vector.broadcast %cst_11 : f32 to vector<1x8xf32>
    %17 = arith.addf %16, %15 : vector<1x8xf32>
    %18 = arith.divf %16, %17 : vector<1x8xf32>
    %c0_12 = arith.constant 0 : index
    %c0_13 = arith.constant 0 : index
    %19 = vector.load %arg6[%c0_12, %c0_13] : memref<1x8xf32, #tpu.memory_space<vmem>>, vector<1x8xf32>
    tpu.vector_store %arg6[%c0_12, %c0_13], %18 {strides = array<i32>} : memref<1x8xf32, #tpu.memory_space<vmem>>, vector<1x8xf32>,
    return
  }
  func.func @transform_0(%arg0: i32) -> (i32, i32) {
    %c0_i32 = arith.constant 0 : i32
    %c0_i32_0 = arith.constant 0 : i32
    return %arg0, %c0_i32 : i32, i32
  }
  func.func @transform_1(%arg0: i32) -> (i32, i32) {
    %c0_i32 = arith.constant 0 : i32
    %c0_i32_0 = arith.constant 0 : i32
    %c0_i32_1 = arith.constant 0 : i32
    return %c0_i32, %c0_i32_0 : i32, i32
  }
  func.func @transform_2(%arg0: i32) -> (i32, i32) {
    %c0_i32 = arith.constant 0 : i32
    %c0_i32_0 = arith.constant 0 : i32
    %c0_i32_1 = arith.constant 0 : i32
    return %c0_i32, %c0_i32_0 : i32, i32
  }
  func.func @transform_3(%arg0: i32) -> (i32, i32) {
    %c0_i32 = arith.constant 0 : i32
    %c0_i32_0 = arith.constant 0 : i32
    %c0_i32_1 = arith.constant 0 : i32
    return %c0_i32, %c0_i32_0 : i32, i32
  }
  func.func @transform_4(%arg0: i32) -> (i32, i32) {
    %c0_i32 = arith.constant 0 : i32
    %c0_i32_0 = arith.constant 0 : i32
    %c0_i32_1 = arith.constant 0 : i32
    return %c0_i32, %c0_i32_0 : i32, i32
  }
  func.func @transform_5(%arg0: i32) -> (i32, i32) {
    %c0_i32 = arith.constant 0 : i32
    %c0_i32_0 = arith.constant 0 : i32
    return %c0_i32, %arg0 : i32, i32
  }
}

</mosaic_0001>

<llo_original>
// kernel: tpu_custom_call.1
$region0: #{tpu_custom_call.1}
  #allocation0 [shape = 'u32[]', space=smem, size = 0x4, offset = 0x4, fixed_abs, tag = 'smem constant byte address 0x4 - core index']
  #allocation1 [shape = 'u32[144,128]{1,0:T(1,128)}', space=vmem, size = 0x12000, scoped, tag = 'internal scratch']
  #allocation2 [shape = 'f32[1,1]{1,0:T(1,128)S(6)}', space=smem, size = 0x200, scoped, tag = 'scoped memory for tpu_custom_call.1']
  %s0 = inlined_call_operand.hbm [shape: f32[8,768], index: 0, kind: input, shape index: {}]
  %s1 = inlined_call_operand.hbm [shape: f32[768,128], index: 1, kind: input, shape index: {}]
  %s2 = inlined_call_operand.vmem [shape: f32[1,128], index: 2, kind: input, shape index: {}]
  %s3 = inlined_call_operand.vmem [shape: f32[8,128], index: 3, kind: input, shape index: {}]
  %s4 = inlined_call_operand.<no memory space> [shape: f32[1,1], index: 4, kind: input, shape index: {}]
  %s5 = inlined_call_operand.hbm [shape: f32[1,8], index: 5, kind: output, shape index: {}]
  %s6 = sld [smem:[#allocation0]]
  $region38: #{tpu_custom_call.1} parent=0
    _
  %s8 = ssub.s32 1, %s6
  %s9 = scalar_select 0, %s8, %s6
  %10 = sst [smem:[#allocation2]] %s4
  $region1: #{tpu_custom_call.1} parent=0
    #allocation3 [shape = 'u8[24576]{0}', space=vmem, size = 0x6000, scoped, tag = 'input window, operand 0, single buffered']
    #allocation4 [shape = 's32[1]{0}', space=sflag, size = 0x4, scoped, tag = 'scoped memory for tpu_custom_call.1']
    #allocation5 [shape = 's32[1]{0}', space=sflag, size = 0x4, scoped, tag = 'scoped memory for tpu_custom_call.1']
    #allocation6 [shape = 'u8[393216]{0}', space=vmem, size = 0x60000, scoped, tag = 'input window, operand 1, single buffered']
    #allocation7 [shape = 's32[1]{0}', space=sflag, size = 0x4, scoped, tag = 'scoped memory for tpu_custom_call.1']
    #allocation8 [shape = 'u8[512]{0}', space=vmem, size = 0x400, scoped, tag = 'output window, operand 0, single buffered']
    %11 = vsyncpa [#allocation4], 0
    %12 = vsyncpa [#allocation7], 0
    %13 = vsyncpa [#allocation5], 0
    // Predicated region
    $region2: #{tpu_custom_call.1} parent=1 // pred_check
      _
    $region3: #{tpu_custom_call.1} parent=1 // pred_check_branch
      %15 = sbr.rel (0) target = $region5
    $region4: #{tpu_custom_call.1} parent=1 // pred_region
      %s17 = ssub.s32 768, 768
      %18 = vsyncadd [#allocation4], %s17
      %s20 = sshll.u32 [#allocation3], 4
      %s21 = int_to_ptr.vmem [resolvable:$true] %s20
      %23 = dma.hbm_to_vmem [thread:$0]  %s0, 768, %s21, [#allocation4]
    $region5: #{tpu_custom_call.1} parent=1 // pred_fallthru
      _
    // Predicated region
    $region6: #{tpu_custom_call.1} parent=1 // pred_check
      _
    $region7: #{tpu_custom_call.1} parent=1 // pred_check_branch
      %25 = sbr.rel (0) target = $region9
    $region8: #{tpu_custom_call.1} parent=1 // pred_region
      %s27 = ssub.s32 12288, 12288
      %28 = vsyncadd [#allocation7], %s27
      %s29 = sshll.u32 [#allocation6], 4
      %s30 = int_to_ptr.vmem [resolvable:$true] %s29
      %35 = dma.hbm_to_vmem [thread:$0]  %s1, 12288, %s30, [#allocation7], 128, 128, 8
    $region9: #{tpu_custom_call.1} parent=1 // pred_fallthru
      _
    // Predicated region
    $region10: #{tpu_custom_call.1} parent=1 // pred_check
      _
    $region11: #{tpu_custom_call.1} parent=1 // pred_check_branch
      %37 = sbr.rel (0) target = $region13
    $region12: #{tpu_custom_call.1} parent=1 // pred_region
      _
    $region13: #{tpu_custom_call.1} parent=1 // pred_fallthru
      _
    // Predicated region
    $region14: #{tpu_custom_call.1} parent=1 // pred_check
      _
    $region15: #{tpu_custom_call.1} parent=1 // pred_check_branch
      %39 = sbr.rel (0) target = $region17
    $region16: #{tpu_custom_call.1} parent=1 // pred_region
      _
    $region17: #{tpu_custom_call.1} parent=1 // pred_fallthru
      _
    // Predicated region
    $region18: #{tpu_custom_call.1} parent=1 // pred_check
      _
    $region19: #{tpu_custom_call.1} parent=1 // pred_check_branch
      %41 = sbr.rel (0) target = $region21
    $region20: #{tpu_custom_call.1} parent=1 // pred_region
      _
    $region21: #{tpu_custom_call.1} parent=1 // pred_fallthru
      _
    // Predicated region
    $region22: #{tpu_custom_call.1} parent=1 // pred_check
      _
    $region23: #{tpu_custom_call.1} parent=1 // pred_check_branch
      %43 = sbr.rel (0) target = $region25
    $region24: #{tpu_custom_call.1} parent=1 // pred_region
      %44 = dma.done [#allocation4], 768
    $region25: #{tpu_custom_call.1} parent=1 // pred_fallthru
      _
    // Predicated region
    $region26: #{tpu_custom_call.1} parent=1 // pred_check
      _
    $region27: #{tpu_custom_call.1} parent=1 // pred_check_branch
      %46 = sbr.rel (0) target = $region29
    $region28: #{tpu_custom_call.1} parent=1 // pred_region
      %47 = dma.done [#allocation7], 12288
    $region29: #{tpu_custom_call.1} parent=1 // pred_fallthru
      _
    %v48 = vld [vmem:[#allocation3] sm:$0xff]
    %v49 = vld [vmem:[#allocation3 + $0x8] sm:$0xff]
    %v50 = vld [vmem:[#allocation3 + $0x10] sm:$0xff]
    %v51 = vld [vmem:[#allocation3 + $0x18] sm:$0xff]
    %v52 = vld [vmem:[#allocation3 + $0x20] sm:$0xff]
    %v53 = vld [vmem:[#allocation3 + $0x28] sm:$0xff]
    %v54 = vld [vmem:[#allocation6] sm:$0xff]
    %v55 = vld [vmem:[#allocation6 + $0x8] sm:$0xff]
    %v56 = vld [vmem:[#allocation6 + $0x10] sm:$0xff]
    %v57 = vld [vmem:[#allocation6 + $0x18] sm:$0xff]
    %v58 = vld [vmem:[#allocation6 + $0x20] sm:$0xff]
    %v59 = vld [vmem:[#allocation6 + $0x28] sm:$0xff]
    %v60 = vld [vmem:[#allocation6 + $0x30] sm:$0xff]
    %v61 = vld [vmem:[#allocation6 + $0x38] sm:$0xff]
    %v62 = vld [vmem:[#allocation6 + $0x40] sm:$0xff]
    %v63 = vld [vmem:[#allocation6 + $0x48] sm:$0xff]
    %v64 = vld [vmem:[#allocation6 + $0x50] sm:$0xff]
    %v65 = vld [vmem:[#allocation6 + $0x58] sm:$0xff]
    %v66 = vld [vmem:[#allocation6 + $0x60] sm:$0xff]
    %v67 = vld [vmem:[#allocation6 + $0x68] sm:$0xff]
    %v68 = vld [vmem:[#allocation6 + $0x70] sm:$0xff]
    %v69 = vld [vmem:[#allocation6 + $0x78] sm:$0xff]
    %v70 = vld [vmem:[#allocation6 + $0x80] sm:$0xff]
    %v71 = vld [vmem:[#allocation6 + $0x88] sm:$0xff]
    %v72 = vld [vmem:[#allocation6 + $0x90] sm:$0xff]
    %v73 = vld [vmem:[#allocation6 + $0x98] sm:$0xff]
    %v74 = vld [vmem:[#allocation6 + $0xa0] sm:$0xff]
    %v75 = vld [vmem:[#allocation6 + $0xa8] sm:$0xff]
    %v76 = vld [vmem:[#allocation6 + $0xb0] sm:$0xff]
    %v77 = vld [vmem:[#allocation6 + $0xb8] sm:$0xff]
    %v78 = vld [vmem:[#allocation6 + $0xc0] sm:$0xff]
    %v79 = vld [vmem:[#allocation6 + $0xc8] sm:$0xff]
    %v80 = vld [vmem:[#allocation6 + $0xd0] sm:$0xff]
    %v81 = vld [vmem:[#allocation6 + $0xd8] sm:$0xff]
    %v82 = vld [vmem:[#allocation6 + $0xe0] sm:$0xff]
    %v83 = vld [vmem:[#allocation6 + $0xe8] sm:$0xff]
    %v84 = vld [vmem:[#allocation6 + $0xf0] sm:$0xff]
    %v85 = vld [vmem:[#allocation6 + $0xf8] sm:$0xff]
    %v86 = vld [vmem:[#allocation6 + $0x100] sm:$0xff]
    %v87 = vld [vmem:[#allocation6 + $0x108] sm:$0xff]
    %v88 = vld [vmem:[#allocation6 + $0x110] sm:$0xff]
    %v89 = vld [vmem:[#allocation6 + $0x118] sm:$0xff]
    %v90 = vld [vmem:[#allocation6 + $0x120] sm:$0xff]
    %v91 = vld [vmem:[#allocation6 + $0x128] sm:$0xff]
    %v92 = vld [vmem:[#allocation6 + $0x130] sm:$0xff]
    %v93 = vld [vmem:[#allocation6 + $0x138] sm:$0xff]
    %v94 = vld [vmem:[#allocation6 + $0x140] sm:$0xff]
    %v95 = vld [vmem:[#allocation6 + $0x148] sm:$0xff]
    %v96 = vld [vmem:[#allocation6 + $0x150] sm:$0xff]
    %v97 = vld [vmem:[#allocation6 + $0x158] sm:$0xff]
    %v98 = vld [vmem:[#allocation6 + $0x160] sm:$0xff]
    %v99 = vld [vmem:[#allocation6 + $0x168] sm:$0xff]
    %v100 = vld [vmem:[#allocation6 + $0x170] sm:$0xff]
    %v101 = vld [vmem:[#allocation6 + $0x178] sm:$0xff]
    %v102 = vld [vmem:[#allocation6 + $0x180] sm:$0xff]
    %v103 = vld [vmem:[#allocation6 + $0x188] sm:$0xff]
    %v104 = vld [vmem:[#allocation6 + $0x190] sm:$0xff]
    %v105 = vld [vmem:[#allocation6 + $0x198] sm:$0xff]
    %v106 = vld [vmem:[#allocation6 + $0x1a0] sm:$0xff]
    %v107 = vld [vmem:[#allocation6 + $0x1a8] sm:$0xff]
    %v108 = vld [vmem:[#allocation6 + $0x1b0] sm:$0xff]
    %v109 = vld [vmem:[#allocation6 + $0x1b8] sm:$0xff]
    %v110 = vld [vmem:[#allocation6 + $0x1c0] sm:$0xff]
    %v111 = vld [vmem:[#allocation6 + $0x1c8] sm:$0xff]
    %v112 = vld [vmem:[#allocation6 + $0x1d0] sm:$0xff]
    %v113 = vld [vmem:[#allocation6 + $0x1d8] sm:$0xff]
    %v114 = vld [vmem:[#allocation6 + $0x1e0] sm:$0xff]
    %v115 = vld [vmem:[#allocation6 + $0x1e8] sm:$0xff]
    %v116 = vld [vmem:[#allocation6 + $0x1f0] sm:$0xff]
    %v117 = vld [vmem:[#allocation6 + $0x1f8] sm:$0xff]
    %v118 = vld [vmem:[#allocation6 + $0x200] sm:$0xff]
    %v119 = vld [vmem:[#allocation6 + $0x208] sm:$0xff]
    %v120 = vld [vmem:[#allocation6 + $0x210] sm:$0xff]
    %v121 = vld [vmem:[#allocation6 + $0x218] sm:$0xff]
    %v122 = vld [vmem:[#allocation6 + $0x220] sm:$0xff]
    %v123 = vld [vmem:[#allocation6 + $0x228] sm:$0xff]
    %v124 = vld [vmem:[#allocation6 + $0x230] sm:$0xff]
    %v125 = vld [vmem:[#allocation6 + $0x238] sm:$0xff]
    %v126 = vld [vmem:[#allocation6 + $0x240] sm:$0xff]
    %v127 = vld [vmem:[#allocation6 + $0x248] sm:$0xff]
    %v128 = vld [vmem:[#allocation6 + $0x250] sm:$0xff]
    %v129 = vld [vmem:[#allocation6 + $0x258] sm:$0xff]
    %v130 = vld [vmem:[#allocation6 + $0x260] sm:$0xff]
    %v131 = vld [vmem:[#allocation6 + $0x268] sm:$0xff]
    %v132 = vld [vmem:[#allocation6 + $0x270] sm:$0xff]
    %v133 = vld [vmem:[#allocation6 + $0x278] sm:$0xff]
    %v134 = vld [vmem:[#allocation6 + $0x280] sm:$0xff]
    %v135 = vld [vmem:[#allocation6 + $0x288] sm:$0xff]
    %v136 = vld [vmem:[#allocation6 + $0x290] sm:$0xff]
    %v137 = vld [vmem:[#allocation6 + $0x298] sm:$0xff]
    %v138 = vld [vmem:[#allocation6 + $0x2a0] sm:$0xff]
    %v139 = vld [vmem:[#allocation6 + $0x2a8] sm:$0xff]
    %v140 = vld [vmem:[#allocation6 + $0x2b0] sm:$0xff]
    %v141 = vld [vmem:[#allocation6 + $0x2b8] sm:$0xff]
    %v142 = vld [vmem:[#allocation6 + $0x2c0] sm:$0xff]
    %v143 = vld [vmem:[#allocation6 + $0x2c8] sm:$0xff]
    %v144 = vld [vmem:[#allocation6 + $0x2d0] sm:$0xff]
    %v145 = vld [vmem:[#allocation6 + $0x2d8] sm:$0xff]
    %v146 = vld [vmem:[#allocation6 + $0x2e0] sm:$0xff]
    %v147 = vld [vmem:[#allocation6 + $0x2e8] sm:$0xff]
    %v148 = vld [vmem:[#allocation6 + $0x2f0] sm:$0xff]
    %v149 = vld [vmem:[#allocation6 + $0x2f8] sm:$0xff]
    %v150 = vld [vmem:[%s2] sm:$0x1]
    %v152 = vlaneseq
    %v153 = vshrl.u32 %v152, 7
    %v154 = vsub.s32 0, %v153
    %v155 = vrot.slane %v150, %v154
    %157 = vmatprep.subr.mxu0 0.0
    %158 = vmatpush1.msra.mxu0 %v54
    %159 = vmatprep.subr.mxu0 0.0
    %160 = vmatpush1.msra.mxu0 %v55
    %161 = vmatprep.subr.mxu0 0.0
    %162 = vmatpush1.msra.mxu0 %v56
    %163 = vmatprep.subr.mxu0 0.0
    %164 = vmatpush1.msra.mxu0 %v57
    %165 = vmatprep.subr.mxu0 0.0
    %166 = vmatpush1.msra.mxu0 %v58
    %167 = vmatprep.subr.mxu0 0.0
    %168 = vmatpush1.msra.mxu0 %v59
    %169 = vmatprep.subr.mxu0 0.0
    %170 = vmatpush1.msra.mxu0 %v60
    %171 = vmatprep.subr.mxu0 0.0
    %172 = vmatpush1.msra.mxu0 %v61
    %173 = vmatprep.subr.mxu0 0.0
    %174 = vmatpush1.msra.mxu0 %v62
    %175 = vmatprep.subr.mxu0 0.0
    %176 = vmatpush1.msra.mxu0 %v63
    %177 = vmatprep.subr.mxu0 0.0
    %178 = vmatpush1.msra.mxu0 %v64
    %179 = vmatprep.subr.mxu0 0.0
    %180 = vmatpush1.msra.mxu0 %v65
    %181 = vmatprep.subr.mxu0 0.0
    %182 = vmatpush1.msra.mxu0 %v66
    %183 = vmatprep.subr.mxu0 0.0
    %184 = vmatpush1.msra.mxu0 %v67
    %185 = vmatprep.subr.mxu0 0.0
    %186 = vmatpush1.msra.mxu0 %v68
    %187 = vmatprep.subr.mxu0 0.0
    %188 = vmatpush1.msra.mxu0 %v69
    %189 = vmatprep.subr.mxu0 0.0
    %190 = vmatpush1.msra.mxu0 %v70
    %191 = vmatprep.subr.mxu0 0.0
    %192 = vmatpush1.msra.mxu0 %v71
    %193 = vmatprep.subr.mxu0 0.0
    %194 = vmatpush1.msra.mxu0 %v72
    %195 = vmatprep.subr.mxu0 0.0
    %196 = vmatpush1.msra.mxu0 %v73
    %197 = vmatprep.subr.mxu0 0.0
    %198 = vmatpush1.msra.mxu0 %v74
    %199 = vmatprep.subr.mxu0 0.0
    %200 = vmatpush1.msra.mxu0 %v75
    %201 = vmatprep.subr.mxu0 0.0
    %202 = vmatpush1.msra.mxu0 %v76
    %203 = vmatprep.subr.mxu0 0.0
    %204 = vmatpush1.msra.mxu0 %v77
    %205 = vmatprep.subr.mxu0 0.0
    %206 = vmatpush1.msra.mxu0 %v78
    %207 = vmatprep.subr.mxu0 0.0
    %208 = vmatpush1.msra.mxu0 %v79
    %209 = vmatprep.subr.mxu0 0.0
    %210 = vmatpush1.msra.mxu0 %v80
    %211 = vmatprep.subr.mxu0 0.0
    %212 = vmatpush1.msra.mxu0 %v81
    %213 = vmatprep.subr.mxu0 0.0
    %214 = vmatpush1.msra.mxu0 %v82
    %215 = vmatprep.subr.mxu0 0.0
    %216 = vmatpush1.msra.mxu0 %v83
    %217 = vmatprep.subr.mxu0 0.0
    %218 = vmatpush1.msra.mxu0 %v84
    %219 = vmatprep.subr.mxu0 0.0
    %220 = vmatpush1.msra.mxu0 %v85
    %221 = vmatprep.mubr.f32.mxu0 %v49
    %222 = vmatmul.mubr.f32.gmra.mrb[0].mxu0 %v48
    %v223 = vpop.f32.mrb[0].mxu0
    %v224 = vadd.f32 %v155, %v223
    %v225 = vpop.f32.mrb[0].mxu0
    %226 = vdwg.mxu0
    %227 = vmatprep.subr.mxu0 0.0
    %228 = vmatpush1.msra.mxu0 %v86
    %229 = vmatprep.subr.mxu0 0.0
    %230 = vmatpush1.msra.mxu0 %v87
    %231 = vmatprep.subr.mxu0 0.0
    %232 = vmatpush1.msra.mxu0 %v88
    %233 = vmatprep.subr.mxu0 0.0
    %234 = vmatpush1.msra.mxu0 %v89
    %235 = vmatprep.subr.mxu0 0.0
    %236 = vmatpush1.msra.mxu0 %v90
    %237 = vmatprep.subr.mxu0 0.0
    %238 = vmatpush1.msra.mxu0 %v91
    %239 = vmatprep.subr.mxu0 0.0
    %240 = vmatpush1.msra.mxu0 %v92
    %241 = vmatprep.subr.mxu0 0.0
    %242 = vmatpush1.msra.mxu0 %v93
    %243 = vmatprep.subr.mxu0 0.0
    %244 = vmatpush1.msra.mxu0 %v94
    %245 = vmatprep.subr.mxu0 0.0
    %246 = vmatpush1.msra.mxu0 %v95
    %247 = vmatprep.subr.mxu0 0.0
    %248 = vmatpush1.msra.mxu0 %v96
    %249 = vmatprep.subr.mxu0 0.0
    %250 = vmatpush1.msra.mxu0 %v97
    %251 = vmatprep.subr.mxu0 0.0
    %252 = vmatpush1.msra.mxu0 %v98
    %253 = vmatprep.subr.mxu0 0.0
    %254 = vmatpush1.msra.mxu0 %v99
    %255 = vmatprep.subr.mxu0 0.0
    %256 = vmatpush1.msra.mxu0 %v100
    %257 = vmatprep.subr.mxu0 0.0
    %258 = vmatpush1.msra.mxu0 %v101
    %259 = vmatprep.subr.mxu0 0.0
    %260 = vmatpush1.msra.mxu0 %v102
    %261 = vmatprep.subr.mxu0 0.0
    %262 = vmatpush1.msra.mxu0 %v103
    %263 = vmatprep.subr.mxu0 0.0
    %264 = vmatpush1.msra.mxu0 %v104
    %265 = vmatprep.subr.mxu0 0.0
    %266 = vmatpush1.msra.mxu0 %v105
    %267 = vmatprep.subr.mxu0 0.0
    %268 = vmatpush1.msra.mxu0 %v106
    %269 = vmatprep.subr.mxu0 0.0
    %270 = vmatpush1.msra.mxu0 %v107
    %271 = vmatprep.subr.mxu0 0.0
    %272 = vmatpush1.msra.mxu0 %v108
    %273 = vmatprep.subr.mxu0 0.0
    %274 = vmatpush1.msra.mxu0 %v109
    %275 = vmatprep.subr.mxu0 0.0
    %276 = vmatpush1.msra.mxu0 %v110
    %277 = vmatprep.subr.mxu0 0.0
    %278 = vmatpush1.msra.mxu0 %v111
    %279 = vmatprep.subr.mxu0 0.0
    %280 = vmatpush1.msra.mxu0 %v112
    %281 = vmatprep.subr.mxu0 0.0
    %282 = vmatpush1.msra.mxu0 %v113
    %283 = vmatprep.subr.mxu0 0.0
    %284 = vmatpush1.msra.mxu0 %v114
    %285 = vmatprep.subr.mxu0 0.0
    %286 = vmatpush1.msra.mxu0 %v115
    %287 = vmatprep.subr.mxu0 0.0
    %288 = vmatpush1.msra.mxu0 %v116
    %289 = vmatprep.subr.mxu0 0.0
    %290 = vmatpush1.msra.mxu0 %v117
    %291 = vmatprep.mubr.f32.mxu0 %v51
    %292 = vmatmul.mubr.f32.gmra.mrb[0].mxu0 %v50
    %v293 = vpop.f32.mrb[0].mxu0
    %v294 = vadd.f32 %v224, %v293
    %v295 = vpop.f32.mrb[0].mxu0
    %296 = vdwg.mxu0
    %297 = vmatprep.subr.mxu0 0.0
    %298 = vmatpush1.msra.mxu0 %v118
    %299 = vmatprep.subr.mxu0 0.0
    %300 = vmatpush1.msra.mxu0 %v119
    %301 = vmatprep.subr.mxu0 0.0
    %302 = vmatpush1.msra.mxu0 %v120
    %303 = vmatprep.subr.mxu0 0.0
    %304 = vmatpush1.msra.mxu0 %v121
    %305 = vmatprep.subr.mxu0 0.0
    %306 = vmatpush1.msra.mxu0 %v122
    %307 = vmatprep.subr.mxu0 0.0
    %308 = vmatpush1.msra.mxu0 %v123
    %309 = vmatprep.subr.mxu0 0.0
    %310 = vmatpush1.msra.mxu0 %v124
    %311 = vmatprep.subr.mxu0 0.0
    %312 = vmatpush1.msra.mxu0 %v125
    %313 = vmatprep.subr.mxu0 0.0
    %314 = vmatpush1.msra.mxu0 %v126
    %315 = vmatprep.subr.mxu0 0.0
    %316 = vmatpush1.msra.mxu0 %v127
    %317 = vmatprep.subr.mxu0 0.0
    %318 = vmatpush1.msra.mxu0 %v128
    %319 = vmatprep.subr.mxu0 0.0
    %320 = vmatpush1.msra.mxu0 %v129
    %321 = vmatprep.subr.mxu0 0.0
    %322 = vmatpush1.msra.mxu0 %v130
    %323 = vmatprep.subr.mxu0 0.0
    %324 = vmatpush1.msra.mxu0 %v131
    %325 = vmatprep.subr.mxu0 0.0
    %326 = vmatpush1.msra.mxu0 %v132
    %327 = vmatprep.subr.mxu0 0.0
    %328 = vmatpush1.msra.mxu0 %v133
    %329 = vmatprep.subr.mxu0 0.0
    %330 = vmatpush1.msra.mxu0 %v134
    %331 = vmatprep.subr.mxu0 0.0
    %332 = vmatpush1.msra.mxu0 %v135
    %333 = vmatprep.subr.mxu0 0.0
    %334 = vmatpush1.msra.mxu0 %v136
    %335 = vmatprep.subr.mxu0 0.0
    %336 = vmatpush1.msra.mxu0 %v137
    %337 = vmatprep.subr.mxu0 0.0
    %338 = vmatpush1.msra.mxu0 %v138
    %339 = vmatprep.subr.mxu0 0.0
    %340 = vmatpush1.msra.mxu0 %v139
    %341 = vmatprep.subr.mxu0 0.0
    %342 = vmatpush1.msra.mxu0 %v140
    %343 = vmatprep.subr.mxu0 0.0
    %344 = vmatpush1.msra.mxu0 %v141
    %345 = vmatprep.subr.mxu0 0.0
    %346 = vmatpush1.msra.mxu0 %v142
    %347 = vmatprep.subr.mxu0 0.0
    %348 = vmatpush1.msra.mxu0 %v143
    %349 = vmatprep.subr.mxu0 0.0
    %350 = vmatpush1.msra.mxu0 %v144
    %351 = vmatprep.subr.mxu0 0.0
    %352 = vmatpush1.msra.mxu0 %v145
    %353 = vmatprep.subr.mxu0 0.0
    %354 = vmatpush1.msra.mxu0 %v146
    %355 = vmatprep.subr.mxu0 0.0
    %356 = vmatpush1.msra.mxu0 %v147
    %357 = vmatprep.subr.mxu0 0.0
    %358 = vmatpush1.msra.mxu0 %v148
    %359 = vmatprep.subr.mxu0 0.0
    %360 = vmatpush1.msra.mxu0 %v149
    %361 = vmatprep.mubr.f32.mxu0 %v53
    %362 = vmatmul.mubr.f32.gmra.mrb[0].mxu0 %v52
    %v363 = vpop.f32.mrb[0].mxu0
    %v364 = vadd.f32 %v294, %v363
    %v365 = vpop.f32.mrb[0].mxu0
    %366 = vdwg.mxu0
    %v367 = vmax.f32 %v364, 0.0
    %v368 = vld [vmem:[%s3] sm:$0xff]
    %369 = vmatprep.subr.mxu0 0.0
    %370 = vmatpush1.xpose.msra.mxu0 %v367
    %371 = vmatprep.subr.mxu0 0.0
    %372 = vmatpush1.xpose.msra.mxu0 0.0
    %373 = vmatprep.subr.mxu0 0.0
    %374 = vmatpush1.xpose.msra.mxu0 0.0
    %375 = vmatprep.subr.mxu0 0.0
    %376 = vmatpush1.xpose.msra.mxu0 0.0
    %377 = vmatprep.subr.mxu0 0.0
    %378 = vmatpush1.xpose.msra.mxu0 0.0
    %379 = vmatprep.subr.mxu0 0.0
    %380 = vmatpush1.xpose.msra.mxu0 0.0
    %381 = vmatprep.subr.mxu0 0.0
    %382 = vmatpush1.xpose.msra.mxu0 0.0
    %383 = vmatprep.subr.mxu0 0.0
    %384 = vmatpush1.xpose.msra.mxu0 0.0
    %385 = vmatprep.subr.mxu0 0.0
    %386 = vmatpush1.xpose.msra.mxu0 0.0
    %387 = vmatprep.subr.mxu0 0.0
    %388 = vmatpush1.xpose.msra.mxu0 0.0
    %389 = vmatprep.subr.mxu0 0.0
    %390 = vmatpush1.xpose.msra.mxu0 0.0
    %391 = vmatprep.subr.mxu0 0.0
    %392 = vmatpush1.xpose.msra.mxu0 0.0
    %393 = vmatprep.subr.mxu0 0.0
    %394 = vmatpush1.xpose.msra.mxu0 0.0
    %395 = vmatprep.subr.mxu0 0.0
    %396 = vmatpush1.xpose.msra.mxu0 0.0
    %397 = vmatprep.subr.mxu0 0.0
    %398 = vmatpush1.xpose.msra.mxu0 0.0
    %399 = vmatprep.subr.mxu0 0.0
    %400 = vmatpush1.xpose.msra.mxu0 0.0
    %401 = vmatprep.subr.mxu0 0.0
    %402 = vmatpush1.xpose.msra.mxu0 0.0
    %403 = vmatprep.subr.mxu0 0.0
    %404 = vmatpush1.xpose.msra.mxu0 0.0
    %405 = vmatprep.subr.mxu0 0.0
    %406 = vmatpush1.xpose.msra.mxu0 0.0
    %407 = vmatprep.subr.mxu0 0.0
    %408 = vmatpush1.xpose.msra.mxu0 0.0
    %409 = vmatprep.subr.mxu0 0.0
    %410 = vmatpush1.xpose.msra.mxu0 0.0
    %411 = vmatprep.subr.mxu0 0.0
    %412 = vmatpush1.xpose.msra.mxu0 0.0
    %413 = vmatprep.subr.mxu0 0.0
    %414 = vmatpush1.xpose.msra.mxu0 0.0
    %415 = vmatprep.subr.mxu0 0.0
    %416 = vmatpush1.xpose.msra.mxu0 0.0
    %417 = vmatprep.subr.mxu0 0.0
    %418 = vmatpush1.xpose.msra.mxu0 0.0
    %419 = vmatprep.subr.mxu0 0.0
    %420 = vmatpush1.xpose.msra.mxu0 0.0
    %421 = vmatprep.subr.mxu0 0.0
    %422 = vmatpush1.xpose.msra.mxu0 0.0
    %423 = vmatprep.subr.mxu0 0.0
    %424 = vmatpush1.xpose.msra.mxu0 0.0
    %425 = vmatprep.subr.mxu0 0.0
    %426 = vmatpush1.xpose.msra.mxu0 0.0
    %427 = vmatprep.subr.mxu0 0.0
    %428 = vmatpush1.xpose.msra.mxu0 0.0
    %429 = vmatprep.subr.mxu0 0.0
    %430 = vmatpush1.xpose.msra.mxu0 0.0
    %431 = vmatprep.subr.mxu0 0.0
    %432 = vmatpush1.xpose.msra.mxu0 0.0
    %433 = vmatprep.mubr.f32.mxu0 0.0
    %434 = vmatmul.mubr.f32.gmra.mrb[0].mxu0 %v368
    %v435 = vpop.f32.mrb[0].mxu0
    %v436 = vadd.f32 0.0, %v435
    %v437 = vpop.f32.mrb[0].mxu0
    %438 = vdwg.mxu0
    %s439 = sld [smem:[#allocation2]]
    %v440 = vstv %s439
    %v441 = vadd.f32 %v436, %v440
    %v442 = vxor.u32 %v441, 2147483648
    %v443 = vmul.f32 %v442, 1.442695
    %v444 = vpow.pop %v443
    %v445 = vadd.f32 %v444, 1.0
    %v446 = vrcp.pop %v445
    %v447 = vmul.f32 1.0, %v446
    %vm448 = vcmask 57344
    %449 = vst.msk [vmem:[#allocation8] sm:$0x1] %vm448, %v447
    // Predicated region
    $region30: #{tpu_custom_call.1} parent=1 // pred_check
      _
    $region31: #{tpu_custom_call.1} parent=1 // pred_check_branch
      %451 = sbr.rel (0) target = $region33
    $region32: #{tpu_custom_call.1} parent=1 // pred_region
      %s453 = ssub.s32 16, 16
      %454 = vsyncadd [#allocation5], %s453
      %s456 = sshll.u32 [#allocation8], 4
      %s457 = int_to_ptr.vmem [resolvable:$true] %s456
      %459 = dma.vmem_to_hbm [thread:$0]  %s457, 16, %s5, [#allocation5]
    $region33: #{tpu_custom_call.1} parent=1 // pred_fallthru
      _
    // Predicated region
    $region34: #{tpu_custom_call.1} parent=1 // pred_check
      _
    $region35: #{tpu_custom_call.1} parent=1 // pred_check_branch
      %461 = sbr.rel (0) target = $region37
    $region36: #{tpu_custom_call.1} parent=1 // pred_region
      %462 = dma.done [#allocation5], 16
    $region37: #{tpu_custom_call.1} parent=1 // pred_fallthru
      _
    %463 = vsyncpa [#allocation4], 1
    %464 = vsyncpa [#allocation7], 1
    %465 = vsyncpa [#allocation5], 1

</llo_original>
